<compile_context>
chip_gen: v6e
topology: v6e:2x2x1
jax: 0.10.0
libtpu: 0.0.40
codegen_flags: <defaults>
</compile_context>

<pallas_src>
import functools

import jax
import jax.numpy as jnp
from jax.experimental import pallas as pl
from jax.experimental.pallas import tpu as pltpu


def _round_up(x, m):
    return ((x + m - 1) // m) * m


def _gcn_fused_kernel(a_ref, w1_ref, w2_ref, o_ref, *, n_support, n_pad, cp):
    # a_ref  : (Np, S*Np)  bf16   [A_0 | A_1 | ...]  lane-concatenated supports
    # w1_ref : (S*Np, Hp)  bf16   row-stacked layer-1 weights
    # w2_ref : (Hp, S*Cp)  bf16   [W2_0 | W2_1 | ...] lane-concatenated
    # o_ref  : (Np, Cp)    f32    output
    #
    # --- layer 1: h = ReLU( [A_0|A_1|...] @ [[W1_0],[W1_1],...] ) --------------
    # One deep-K (K = S*Np) MXU pass, f32 accumulation, ReLU kept in vregs.
    h32 = jnp.dot(a_ref[...], w1_ref[...], preferred_element_type=jnp.float32)
    h = jnp.maximum(h32, 0.0).astype(jnp.bfloat16)

    # --- layer 2 pre-multiply: pre = relu(h) @ [W2_0 | W2_1 | ...] --------------
    # (h @ W2_s hoisted out of the S loop; one wide lane-dense matmul.)
    pre = jnp.dot(h, w2_ref[...],
                  preferred_element_type=jnp.float32).astype(jnp.bfloat16)

    # --- layer 2: out = sum_s A_s @ pre_s  (static unroll, no zero-init/RMW) ----
    acc = None
    for s in range(n_support):
        a_s = a_ref[:, s * n_pad:(s + 1) * n_pad]          # static lane slice
        p_s = pre[:, s * cp:(s + 1) * cp]                   # static lane slice
        term = jnp.dot(a_s, p_s, preferred_element_type=jnp.float32)
        acc = term if acc is None else acc + term
    o_ref[...] = acc


def prepare_gcn_params(support, w1, w2):
    """One-time layout/padding of the GCN parameters (keep OUT of the hot path).

    support: (S, N, N) f32; w1: (S, N, H) f32; w2: (S, H, C) f32.
    Returns bf16 arrays: A lane-concat (Np, S*Np), W1 row-stacked (S*Np, Hp),
    W2 lane-concat (Hp, S*Cp), plus static dims.
    """
    S, N, _ = support.shape
    H = w1.shape[-1]
    C = w2.shape[-1]

    # Lane-dense zero padding (exact math: padded rows/cols are zero).
    Np = _round_up(N, 128)
    Hp = _round_up(H, 128)   # 200 -> 256
    Cp = _round_up(C, 128)   # 10  -> 128

    a_pad = jnp.zeros((S, Np, Np), jnp.float32).at[:, :N, :N].set(support)
    # (S, Np, Np) -> (Np, S*Np): a_cat[:, s*Np:(s+1)*Np] == A_s
    a_cat = jnp.transpose(a_pad, (1, 0, 2)).reshape(Np, S * Np).astype(jnp.bfloat16)

    w1_pad = jnp.zeros((S, Np, Hp), jnp.float32).at[:, :N, :H].set(w1)
    # (S, Np, Hp) -> (S*Np, Hp): row-stacked so A_cat @ W1_stk = sum_s A_s @ W1_s
    w1_stk = w1_pad.reshape(S * Np, Hp).astype(jnp.bfloat16)

    w2_pad = jnp.zeros((S, Hp, Cp), jnp.float32).at[:, :H, :C].set(w2)
    # (S, Hp, Cp) -> (Hp, S*Cp): one wide resident block, one wide h@W2 matmul.
    w2_all = jnp.transpose(w2_pad, (1, 0, 2)).reshape(Hp, S * Cp).astype(jnp.bfloat16)

    return a_cat, w1_stk, w2_all, (S, N, C, Np, Hp, Cp)


def gcn_forward_prepared(a_cat, w1_stk, w2_all, *, dims):
    S, N, C, Np, Hp, Cp = dims

    kernel = functools.partial(_gcn_fused_kernel, n_support=S, n_pad=Np, cp=Cp)

    # Roofline numbers (advisory): A is read exactly once (bf16), out written once.
    flops = (2 * Np * (S * Np) * Hp          # layer-1 deep-K matmul
             + 2 * Np * Hp * (S * Cp)        # pre = relu(h) @ W2_all
             + 2 * S * Np * Np * Cp)         # layer-2 accumulation
    in_bytes = 2 * (a_cat.size + w1_stk.size + w2_all.size)   # bf16
    bytes_accessed = in_bytes + 4 * Np * Cp

    # Explicit scoped-VMEM limit: 2 pipeline buffers per input + output + the
    # f32 h/pre intermediates, with 2x headroom; clamp to 56 MiB (v7x physical
    # VMEM is 64 MiB; v5e/v6e have 128 MiB so 56 MiB is always safe).
    vmem_need = (2 * in_bytes + 2 * 4 * Np * Cp
                 + 4 * Np * Hp + 4 * Np * (S * Cp))
    vmem_limit = int(min(max(2 * vmem_need, 32 * 1024 * 1024), 56 * 1024 * 1024))

    out_padded = pl.pallas_call(
        kernel,
        out_shape=jax.ShapeDtypeStruct((Np, Cp), jnp.float32),
        grid_spec=pltpu.PrefetchScalarGridSpec(
            num_scalar_prefetch=0,
            grid=(1,),
            in_specs=[
                pl.BlockSpec((Np, S * Np), lambda i: (0, 0)),   # A (lane-concat)
                pl.BlockSpec((S * Np, Hp), lambda i: (0, 0)),   # W1 (row-stacked)
                pl.BlockSpec((Hp, S * Cp), lambda i: (0, 0)),   # W2 (lane-concat)
            ],
            out_specs=pl.BlockSpec((Np, Cp), lambda i: (0, 0)),
        ),
        compiler_params=pltpu.CompilerParams(
            dimension_semantics=("arbitrary",),
            vmem_limit_bytes=vmem_limit),
        cost_estimate=pl.CostEstimate(
            flops=flops, transcendentals=0, bytes_accessed=bytes_accessed),
    )(a_cat, w1_stk, w2_all)

    return out_padded[:N, :C]


def gcn_forward(support, w1, w2, x=None):
    """Convenience wrapper (prep + fused kernel). `x` is ignored: layer1 is
    featureless and dropout_rate=0.0 in the PyTorch module."""
    del x
    a_cat, w1_stk, w2_all, dims = prepare_gcn_params(support, w1, w2)
    return gcn_forward_prepared(a_cat, w1_stk, w2_all, dims=dims)


def gcn_reference(support, w1, w2):
    h = jnp.maximum(
        sum(support[s] @ w1[s] for s in range(support.shape[0])), 0.0)
    return sum(support[s] @ (h @ w2[s]) for s in range(support.shape[0]))


if __name__ == "__main__":
    # Small, self-consistent shapes: input_dim == N (featureless text-GCN),
    # hidden = 200 (fixed by the module), num_classes = 10, 2 support matrices.
    N = 128            # number of graph nodes == input_dim
    H = 200            # layer1 output dim (hard-coded in GCN)
    C = 10             # num_classes
    S = 2              # len(support)

    key = jax.random.PRNGKey(0)
    k_a, k_w1, k_w2, k_x = jax.random.split(key, 4)

    support = jax.random.normal(k_a, (S, N, N), dtype=jnp.float32) * 0.1
    w1 = jax.random.normal(k_w1, (S, N, H), dtype=jnp.float32)   # torch.randn init
    w2 = jax.random.normal(k_w2, (S, H, C), dtype=jnp.float32)   # torch.randn init
    x = jax.random.normal(k_x, (N, N), dtype=jnp.float32)        # unused (featureless)

    # One-time layout/padding (weight-stationary), then the jitted fused forward.
    a_cat, w1_stk, w2_all, dims = prepare_gcn_params(support, w1, w2)
    fwd = jax.jit(functools.partial(gcn_forward_prepared, dims=dims))

    out = jax.block_until_ready(fwd(a_cat, w1_stk, w2_all))

    ref = gcn_reference(support, w1, w2)
    assert out.shape == (N, C)
    # bf16 MXU inputs (f32 accumulation): compare with a scale-aware bound.
    err = float(jnp.max(jnp.abs(out - ref)))
    scale = float(jnp.max(jnp.abs(ref)))
    assert err <= 0.05 * scale, f"mismatch vs reference: err={err}, scale={scale}"

    print("KERNEL_OK")
</pallas_src>

<mosaic_0001>
module attributes {stable_mosaic.version = 11 : i64} {
  func.func @_gcn_fused_kernel(%arg0: i32, %arg1: memref<128x256xbf16, #tpu.memory_space<vmem>>, %arg2: memref<256x256xbf16, #tpu.memory_space<vmem>>, %arg3: memref<256x256xbf16, #tpu.memory_space<vmem>>, %arg4: memref<128x128xf32, #tpu.memory_space<vmem>>) attributes {dimension_semantics = [#tpu.dimension_semantics<arbitrary>], iteration_bounds = array<i64: 1>, scalar_prefetch = 0 : i64, scratch_operands = 0 : i64, tpu.core_type = #tpu.core_type<tc>, window_params = [{pipeline_mode = #tpu.pipeline_mode<synchronous>, transform_indices = @transform_0, window_bounds = array<i64: 128, 256>}, {pipeline_mode = #tpu.pipeline_mode<synchronous>, transform_indices = @transform_1, window_bounds = array<i64: 256, 256>}, {pipeline_mode = #tpu.pipeline_mode<synchronous>, transform_indices = @transform_2, window_bounds = array<i64: 256, 256>}, {pipeline_mode = #tpu.pipeline_mode<synchronous>, transform_indices = @transform_3, window_bounds = array<i64: 128, 128>}]} {
    %c0 = arith.constant 0 : index
    %c0_0 = arith.constant 0 : index
    %0 = vector.load %arg1[%c0, %c0_0] : memref<128x256xbf16, #tpu.memory_space<vmem>>, vector<128x256xbf16>
    %c0_1 = arith.constant 0 : index
    %c0_2 = arith.constant 0 : index
    %1 = vector.load %arg2[%c0_1, %c0_2] : memref<256x256xbf16, #tpu.memory_space<vmem>>, vector<256x256xbf16>
    %cst = arith.constant dense<0.000000e+00> : vector<128x256xf32>
    %2 = tpu.matmul %0, %1, %cst {dimension_numbers = #tpu.dot_dimension_numbers<[1], [0], [0], [1], [0, 0, 1, 1], [], []>} : vector<128x256xbf16>, vector<256x256xbf16>, vector<128x256xf32> -> vector<128x256xf32>
    %cst_3 = arith.constant 0.000000e+00 : f32
    %3 = vector.broadcast %cst_3 : f32 to vector<128x256xf32>
    %4 = arith.maximumf %2, %3 : vector<128x256xf32>
    %5 = arith.truncf %4 : vector<128x256xf32> to vector<128x256xbf16>
    %c0_4 = arith.constant 0 : index
    %c0_5 = arith.constant 0 : index
    %6 = vector.load %arg3[%c0_4, %c0_5] : memref<256x256xbf16, #tpu.memory_space<vmem>>, vector<256x256xbf16>
    %cst_6 = arith.constant dense<0.000000e+00> : vector<128x256xf32>
    %7 = tpu.matmul %5, %6, %cst_6 {dimension_numbers = #tpu.dot_dimension_numbers<[1], [0], [0], [1], [0, 0, 1, 1], [], []>} : vector<128x256xbf16>, vector<256x256xbf16>, vector<128x256xf32> -> vector<128x256xf32>
    %8 = arith.truncf %7 : vector<128x256xf32> to vector<128x256xbf16>
    %c0_7 = arith.constant 0 : index
    %c0_8 = arith.constant 0 : index
    %9 = vector.load %arg1[%c0_7, %c0_8] : memref<128x256xbf16, #tpu.memory_space<vmem>>, vector<128x128xbf16>
    %10 = vector.extract_strided_slice %8 {offsets = [0, 0], sizes = [128, 128], strides = [1, 1]} : vector<128x256xbf16> to vector<128x128xbf16>
    %cst_9 = arith.constant dense<0.000000e+00> : vector<128x128xf32>
    %11 = tpu.matmul %9, %10, %cst_9 {dimension_numbers = #tpu.dot_dimension_numbers<[1], [0], [0], [1], [0, 0, 1, 1], [], []>} : vector<128x128xbf16>, vector<128x128xbf16>, vector<128x128xf32> -> vector<128x128xf32>
    %c0_10 = arith.constant 0 : index
    %c128 = arith.constant 128 : index
    %12 = vector.load %arg1[%c0_10, %c128] : memref<128x256xbf16, #tpu.memory_space<vmem>>, vector<128x128xbf16>
    %13 = vector.extract_strided_slice %8 {offsets = [0, 128], sizes = [128, 128], strides = [1, 1]} : vector<128x256xbf16> to vector<128x128xbf16>
    %cst_11 = arith.constant dense<0.000000e+00> : vector<128x128xf32>
    %14 = tpu.matmul %12, %13, %cst_11 {dimension_numbers = #tpu.dot_dimension_numbers<[1], [0], [0], [1], [0, 0, 1, 1], [], []>} : vector<128x128xbf16>, vector<128x128xbf16>, vector<128x128xf32> -> vector<128x128xf32>
    %15 = arith.addf %11, %14 : vector<128x128xf32>
    %c0_12 = arith.constant 0 : index
    %c0_13 = arith.constant 0 : index
    %16 = vector.load %arg4[%c0_12, %c0_13] : memref<128x128xf32, #tpu.memory_space<vmem>>, vector<128x128xf32>
    tpu.vector_store %arg4[%c0_12, %c0_13], %15 {strides = array<i32>} : memref<128x128xf32, #tpu.memory_space<vmem>>, vector<128x128xf32>,
    return
  }
  func.func @transform_0(%arg0: i32) -> (i32, i32) {
    %c0_i32 = arith.constant 0 : i32
    %c0_i32_0 = arith.constant 0 : i32
    %c0_i32_1 = arith.constant 0 : i32
    return %c0_i32, %c0_i32_0 : i32, i32
  }
  func.func @transform_1(%arg0: i32) -> (i32, i32) {
    %c0_i32 = arith.constant 0 : i32
    %c0_i32_0 = arith.constant 0 : i32
    %c0_i32_1 = arith.constant 0 : i32
    return %c0_i32, %c0_i32_0 : i32, i32
  }
  func.func @transform_2(%arg0: i32) -> (i32, i32) {
    %c0_i32 = arith.constant 0 : i32
    %c0_i32_0 = arith.constant 0 : i32
    %c0_i32_1 = arith.constant 0 : i32
    return %c0_i32, %c0_i32_0 : i32, i32
  }
  func.func @transform_3(%arg0: i32) -> (i32, i32) {
    %c0_i32 = arith.constant 0 : i32
    %c0_i32_0 = arith.constant 0 : i32
    %c0_i32_1 = arith.constant 0 : i32
    return %c0_i32, %c0_i32_0 : i32, i32
  }
}

</mosaic_0001>

<llo_original>
// kernel: gcn_forward_prepared.1
$region0: #{gcn_forward_prepared.1}
  #allocation0 [shape = 'u32[]', space=smem, size = 0x4, offset = 0x4, fixed_abs, tag = 'smem constant byte address 0x4 - core index']
  #allocation1 [shape = 'u32[144,128]{1,0:T(1,128)}', space=vmem, size = 0x12000, scoped, tag = 'internal scratch']
  %s0 = inlined_call_operand.hbm [shape: bf16[128,256], index: 0, kind: input, shape index: {}]
  %s1 = inlined_call_operand.hbm [shape: bf16[256,256], index: 1, kind: input, shape index: {}]
  %s2 = inlined_call_operand.hbm [shape: bf16[256,256], index: 2, kind: input, shape index: {}]
  %s3 = inlined_call_operand.vmem [shape: f32[128,128], index: 3, kind: output, shape index: {}]
  %s4 = sld [smem:[#allocation0]]
  $region34: #{gcn_forward_prepared.1} parent=0
    _
  %s6 = ssub.s32 1, %s4
  %s7 = scalar_select 0, %s6, %s4
  $region1: #{gcn_forward_prepared.1} parent=0
    #allocation2 [shape = 'u8[65536]{0}', space=vmem, size = 0x10000, scoped, tag = 'input window, operand 0, single buffered']
    #allocation3 [shape = 's32[1]{0}', space=sflag, size = 0x4, scoped, tag = 'scoped memory for gcn_forward_prepared.1']
    #allocation4 [shape = 'u8[131072]{0}', space=vmem, size = 0x20000, scoped, tag = 'input window, operand 1, single buffered']
    #allocation5 [shape = 's32[1]{0}', space=sflag, size = 0x4, scoped, tag = 'scoped memory for gcn_forward_prepared.1']
    #allocation6 [shape = 'u8[131072]{0}', space=vmem, size = 0x20000, scoped, tag = 'input window, operand 2, single buffered']
    %8 = vsyncpa [#allocation3], 0
    %9 = vsyncpa [#allocation5], 0
    // Predicated region
    $region2: #{gcn_forward_prepared.1} parent=1 // pred_check
      _
    $region3: #{gcn_forward_prepared.1} parent=1 // pred_check_branch
      %11 = sbr.rel (0) target = $region5
    $region4: #{gcn_forward_prepared.1} parent=1 // pred_region
      %s13 = ssub.s32 2048, 2048
      %14 = vsyncadd [#allocation3], %s13
      %s15 = sshll.u32 [#allocation2], 4
      %s16 = int_to_ptr.vmem [resolvable:$true] %s15
      %21 = dma.hbm_to_vmem [thread:$0]  %s0, 2048, %s16, [#allocation3], 128, 128, 8
    $region5: #{gcn_forward_prepared.1} parent=1 // pred_fallthru
      _
    // Predicated region
    $region6: #{gcn_forward_prepared.1} parent=1 // pred_check
      _
    $region7: #{gcn_forward_prepared.1} parent=1 // pred_check_branch
      %23 = sbr.rel (0) target = $region9
    $region8: #{gcn_forward_prepared.1} parent=1 // pred_region
      %s25 = ssub.s32 4096, 4096
      %26 = vsyncadd [#allocation5], %s25
      %s27 = sshll.u32 [#allocation4], 4
      %s28 = int_to_ptr.vmem [resolvable:$true] %s27
      %33 = dma.hbm_to_vmem [thread:$0]  %s1, 4096, %s28, [#allocation5], 128, 128, 8
    $region9: #{gcn_forward_prepared.1} parent=1 // pred_fallthru
      _
    // Predicated region
    $region10: #{gcn_forward_prepared.1} parent=1 // pred_check
      _
    $region11: #{gcn_forward_prepared.1} parent=1 // pred_check_branch
      %35 = sbr.rel (0) target = $region13
    $region12: #{gcn_forward_prepared.1} parent=1 // pred_region
      %s37 = ssub.s32 4096, 4096
      %38 = vsyncadd [#allocation5], %s37
      %s39 = sshll.u32 [#allocation6], 4
      %s40 = int_to_ptr.vmem [resolvable:$true] %s39
      %45 = dma.hbm_to_vmem [thread:$0]  %s2, 4096, %s40, [#allocation5], 128, 128, 8
    $region13: #{gcn_forward_prepared.1} parent=1 // pred_fallthru
      _
    // Predicated region
    $region14: #{gcn_forward_prepared.1} parent=1 // pred_check
      _
    $region15: #{gcn_forward_prepared.1} parent=1 // pred_check_branch
      %47 = sbr.rel (0) target = $region17
    $region16: #{gcn_forward_prepared.1} parent=1 // pred_region
      %48 = dma.done [#allocation3], 2048
    $region17: #{gcn_forward_prepared.1} parent=1 // pred_fallthru
      _
    // Predicated region
    $region18: #{gcn_forward_prepared.1} parent=1 // pred_check
      _
    $region19: #{gcn_forward_prepared.1} parent=1 // pred_check_branch
      %50 = sbr.rel (0) target = $region21
    $region20: #{gcn_forward_prepared.1} parent=1 // pred_region
      %51 = dma.done [#allocation5], 4096
    $region21: #{gcn_forward_prepared.1} parent=1 // pred_fallthru
      _
    // Predicated region
    $region22: #{gcn_forward_prepared.1} parent=1 // pred_check
      _
    $region23: #{gcn_forward_prepared.1} parent=1 // pred_check_branch
      %53 = sbr.rel (0) target = $region25
    $region24: #{gcn_forward_prepared.1} parent=1 // pred_region
      %54 = dma.done [#allocation5], 4096
    $region25: #{gcn_forward_prepared.1} parent=1 // pred_fallthru
      _
    %v56 = vld [vmem:[#allocation2] sm:$0xff]
    %v57 = vld [vmem:[#allocation2 + $0x8] sm:$0xff]
    %v58 = vld [vmem:[#allocation2 + $0x10] sm:$0xff]
    %v59 = vld [vmem:[#allocation2 + $0x18] sm:$0xff]
    %v60 = vld [vmem:[#allocation2 + $0x20] sm:$0xff]
    %v61 = vld [vmem:[#allocation2 + $0x28] sm:$0xff]
    %v62 = vld [vmem:[#allocation2 + $0x30] sm:$0xff]
    %v63 = vld [vmem:[#allocation2 + $0x38] sm:$0xff]
    %v64 = vld [vmem:[#allocation2 + $0x40] sm:$0xff]
    %v65 = vld [vmem:[#allocation2 + $0x48] sm:$0xff]
    %v66 = vld [vmem:[#allocation2 + $0x50] sm:$0xff]
    %v67 = vld [vmem:[#allocation2 + $0x58] sm:$0xff]
    %v68 = vld [vmem:[#allocation2 + $0x60] sm:$0xff]
    %v69 = vld [vmem:[#allocation2 + $0x68] sm:$0xff]
    %v70 = vld [vmem:[#allocation2 + $0x70] sm:$0xff]
    %v71 = vld [vmem:[#allocation2 + $0x78] sm:$0xff]
    %v72 = vld [vmem:[#allocation4] sm:$0xff]
    %v73 = vld [vmem:[#allocation4 + $0x8] sm:$0xff]
    %v74 = vld [vmem:[#allocation4 + $0x10] sm:$0xff]
    %v75 = vld [vmem:[#allocation4 + $0x18] sm:$0xff]
    %v76 = vld [vmem:[#allocation4 + $0x20] sm:$0xff]
    %v77 = vld [vmem:[#allocation4 + $0x28] sm:$0xff]
    %v78 = vld [vmem:[#allocation4 + $0x30] sm:$0xff]
    %v79 = vld [vmem:[#allocation4 + $0x38] sm:$0xff]
    %v80 = vld [vmem:[#allocation4 + $0x40] sm:$0xff]
    %v81 = vld [vmem:[#allocation4 + $0x48] sm:$0xff]
    %v82 = vld [vmem:[#allocation4 + $0x50] sm:$0xff]
    %v83 = vld [vmem:[#allocation4 + $0x58] sm:$0xff]
    %v84 = vld [vmem:[#allocation4 + $0x60] sm:$0xff]
    %v85 = vld [vmem:[#allocation4 + $0x68] sm:$0xff]
    %v86 = vld [vmem:[#allocation4 + $0x70] sm:$0xff]
    %v87 = vld [vmem:[#allocation4 + $0x78] sm:$0xff]
    %v88 = vld [vmem:[#allocation4 + $0x80] sm:$0xff]
    %v89 = vld [vmem:[#allocation4 + $0x88] sm:$0xff]
    %v90 = vld [vmem:[#allocation4 + $0x90] sm:$0xff]
    %v91 = vld [vmem:[#allocation4 + $0x98] sm:$0xff]
    %v92 = vld [vmem:[#allocation4 + $0xa0] sm:$0xff]
    %v93 = vld [vmem:[#allocation4 + $0xa8] sm:$0xff]
    %v94 = vld [vmem:[#allocation4 + $0xb0] sm:$0xff]
    %v95 = vld [vmem:[#allocation4 + $0xb8] sm:$0xff]
    %v96 = vld [vmem:[#allocation4 + $0xc0] sm:$0xff]
    %v97 = vld [vmem:[#allocation4 + $0xc8] sm:$0xff]
    %v98 = vld [vmem:[#allocation4 + $0xd0] sm:$0xff]
    %v99 = vld [vmem:[#allocation4 + $0xd8] sm:$0xff]
    %v100 = vld [vmem:[#allocation4 + $0xe0] sm:$0xff]
    %v101 = vld [vmem:[#allocation4 + $0xe8] sm:$0xff]
    %v102 = vld [vmem:[#allocation4 + $0xf0] sm:$0xff]
    %v103 = vld [vmem:[#allocation4 + $0xf8] sm:$0xff]
    %v120 = vunpack.c.l.b16 %v56
    %v121 = vunpack.c.h.b16 %v56
    %v122 = vunpack.c.l.b16 %v57
    %v123 = vunpack.c.h.b16 %v57
    %v124 = vunpack.c.l.b16 %v58
    %v125 = vunpack.c.h.b16 %v58
    %v126 = vunpack.c.l.b16 %v59
    %v127 = vunpack.c.h.b16 %v59
    %v128 = vunpack.c.l.b16 %v60
    %v129 = vunpack.c.h.b16 %v60
    %v130 = vunpack.c.l.b16 %v61
    %v131 = vunpack.c.h.b16 %v61
    %v132 = vunpack.c.l.b16 %v62
    %v133 = vunpack.c.h.b16 %v62
    %v134 = vunpack.c.l.b16 %v63
    %v135 = vunpack.c.h.b16 %v63
    %v136 = vunpack.c.l.b16 %v64
    %v137 = vunpack.c.h.b16 %v64
    %v138 = vunpack.c.l.b16 %v65
    %v139 = vunpack.c.h.b16 %v65
    %v140 = vunpack.c.l.b16 %v66
    %v141 = vunpack.c.h.b16 %v66
    %v142 = vunpack.c.l.b16 %v67
    %v143 = vunpack.c.h.b16 %v67
    %v144 = vunpack.c.l.b16 %v68
    %v145 = vunpack.c.h.b16 %v68
    %v146 = vunpack.c.l.b16 %v69
    %v147 = vunpack.c.h.b16 %v69
    %v148 = vunpack.c.l.b16 %v70
    %v149 = vunpack.c.h.b16 %v70
    %v150 = vunpack.c.l.b16 %v71
    %v151 = vunpack.c.h.b16 %v71
    %v152 = vpack.c.b16 %v122, %v120
    %v153 = vpack.c.b16 %v123, %v121
    %v154 = vpack.c.b16 %v126, %v124
    %v155 = vpack.c.b16 %v127, %v125
    %v156 = vpack.c.b16 %v130, %v128
    %v157 = vpack.c.b16 %v131, %v129
    %v158 = vpack.c.b16 %v134, %v132
    %v159 = vpack.c.b16 %v135, %v133
    %v160 = vpack.c.b16 %v138, %v136
    %v161 = vpack.c.b16 %v139, %v137
    %v162 = vpack.c.b16 %v142, %v140
    %v163 = vpack.c.b16 %v143, %v141
    %v164 = vpack.c.b16 %v146, %v144
    %v165 = vpack.c.b16 %v147, %v145
    %v166 = vpack.c.b16 %v150, %v148
    %v167 = vpack.c.b16 %v151, %v149
    %v216 = vunpack.c.l.b16 %v72
    %v217 = vunpack.c.h.b16 %v72
    %v218 = vunpack.c.l.b16 %v73
    %v219 = vunpack.c.h.b16 %v73
    %v220 = vunpack.c.l.b16 %v74
    %v221 = vunpack.c.h.b16 %v74
    %v222 = vunpack.c.l.b16 %v75
    %v223 = vunpack.c.h.b16 %v75
    %v224 = vunpack.c.l.b16 %v76
    %v225 = vunpack.c.h.b16 %v76
    %v226 = vunpack.c.l.b16 %v77
    %v227 = vunpack.c.h.b16 %v77
    %v228 = vunpack.c.l.b16 %v78
    %v229 = vunpack.c.h.b16 %v78
    %v230 = vunpack.c.l.b16 %v79
    %v231 = vunpack.c.h.b16 %v79
    %v232 = vunpack.c.l.b16 %v80
    %v233 = vunpack.c.h.b16 %v80
    %v234 = vunpack.c.l.b16 %v81
    %v235 = vunpack.c.h.b16 %v81
    %v236 = vunpack.c.l.b16 %v82
    %v237 = vunpack.c.h.b16 %v82
    %v238 = vunpack.c.l.b16 %v83
    %v239 = vunpack.c.h.b16 %v83
    %v240 = vunpack.c.l.b16 %v84
    %v241 = vunpack.c.h.b16 %v84
    %v242 = vunpack.c.l.b16 %v85
    %v243 = vunpack.c.h.b16 %v85
    %v244 = vunpack.c.l.b16 %v86
    %v245 = vunpack.c.h.b16 %v86
    %v246 = vunpack.c.l.b16 %v87
    %v247 = vunpack.c.h.b16 %v87
    %v248 = vunpack.c.l.b16 %v88
    %v249 = vunpack.c.h.b16 %v88
    %v250 = vunpack.c.l.b16 %v89
    %v251 = vunpack.c.h.b16 %v89
    %v252 = vunpack.c.l.b16 %v90
    %v253 = vunpack.c.h.b16 %v90
    %v254 = vunpack.c.l.b16 %v91
    %v255 = vunpack.c.h.b16 %v91
    %v256 = vunpack.c.l.b16 %v92
    %v257 = vunpack.c.h.b16 %v92
    %v258 = vunpack.c.l.b16 %v93
    %v259 = vunpack.c.h.b16 %v93
    %v260 = vunpack.c.l.b16 %v94
    %v261 = vunpack.c.h.b16 %v94
    %v262 = vunpack.c.l.b16 %v95
    %v263 = vunpack.c.h.b16 %v95
    %v264 = vunpack.c.l.b16 %v96
    %v265 = vunpack.c.h.b16 %v96
    %v266 = vunpack.c.l.b16 %v97
    %v267 = vunpack.c.h.b16 %v97
    %v268 = vunpack.c.l.b16 %v98
    %v269 = vunpack.c.h.b16 %v98
    %v270 = vunpack.c.l.b16 %v99
    %v271 = vunpack.c.h.b16 %v99
    %v272 = vunpack.c.l.b16 %v100
    %v273 = vunpack.c.h.b16 %v100
    %v274 = vunpack.c.l.b16 %v101
    %v275 = vunpack.c.h.b16 %v101
    %v276 = vunpack.c.l.b16 %v102
    %v277 = vunpack.c.h.b16 %v102
    %v278 = vunpack.c.l.b16 %v103
    %v279 = vunpack.c.h.b16 %v103
    %v280 = vpack.c.b16 %v218, %v216
    %v281 = vpack.c.b16 %v219, %v217
    %v282 = vpack.c.b16 %v222, %v220
    %v283 = vpack.c.b16 %v223, %v221
    %v284 = vpack.c.b16 %v226, %v224
    %v285 = vpack.c.b16 %v227, %v225
    %v286 = vpack.c.b16 %v230, %v228
    %v287 = vpack.c.b16 %v231, %v229
    %v288 = vpack.c.b16 %v234, %v232
    %v289 = vpack.c.b16 %v235, %v233
    %v290 = vpack.c.b16 %v238, %v236
    %v291 = vpack.c.b16 %v239, %v237
    %v292 = vpack.c.b16 %v242, %v240
    %v293 = vpack.c.b16 %v243, %v241
    %v294 = vpack.c.b16 %v246, %v244
    %v295 = vpack.c.b16 %v247, %v245
    %v296 = vpack.c.b16 %v250, %v248
    %v297 = vpack.c.b16 %v251, %v249
    %v298 = vpack.c.b16 %v254, %v252
    %v299 = vpack.c.b16 %v255, %v253
    %v300 = vpack.c.b16 %v258, %v256
    %v301 = vpack.c.b16 %v259, %v257
    %v302 = vpack.c.b16 %v262, %v260
    %v303 = vpack.c.b16 %v263, %v261
    %v304 = vpack.c.b16 %v266, %v264
    %v305 = vpack.c.b16 %v267, %v265
    %v306 = vpack.c.b16 %v270, %v268
    %v307 = vpack.c.b16 %v271, %v269
    %v308 = vpack.c.b16 %v274, %v272
    %v309 = vpack.c.b16 %v275, %v273
    %v310 = vpack.c.b16 %v278, %v276
    %v311 = vpack.c.b16 %v279, %v277
    %344 = vmatprep.subr.bf16.mxu0 %v295
    %345 = vmatpush1.bf16.msra.mxu0 %v294
    %346 = vmatprep.subr.bf16.mxu0 %v293
    %347 = vmatpush1.bf16.msra.mxu0 %v292
    %348 = vmatprep.subr.bf16.mxu0 %v291
    %349 = vmatpush1.bf16.msra.mxu0 %v290
    %350 = vmatprep.subr.bf16.mxu0 %v289
    %351 = vmatpush1.bf16.msra.mxu0 %v288
    %352 = vmatprep.subr.bf16.mxu0 %v287
    %353 = vmatpush1.bf16.msra.mxu0 %v286
    %354 = vmatprep.subr.bf16.mxu0 %v285
    %355 = vmatpush1.bf16.msra.mxu0 %v284
    %356 = vmatprep.subr.bf16.mxu0 %v283
    %357 = vmatpush1.bf16.msra.mxu0 %v282
    %358 = vmatprep.subr.bf16.mxu0 %v281
    %359 = vmatpush1.bf16.msra.mxu0 %v280
    %360 = vmatprep.subr.bf16.mxu0 %v311
    %361 = vmatpush2.bf16.msra.mxu0 %v310
    %362 = vmatprep.subr.bf16.mxu0 %v309
    %363 = vmatpush2.bf16.msra.mxu0 %v308
    %364 = vmatprep.subr.bf16.mxu0 %v307
    %365 = vmatpush2.bf16.msra.mxu0 %v306
    %366 = vmatprep.subr.bf16.mxu0 %v305
    %367 = vmatpush2.bf16.msra.mxu0 %v304
    %368 = vmatprep.subr.bf16.mxu0 %v303
    %369 = vmatpush2.bf16.msra.mxu0 %v302
    %370 = vmatprep.subr.bf16.mxu0 %v301
    %371 = vmatpush2.bf16.msra.mxu0 %v300
    %372 = vmatprep.subr.bf16.mxu0 %v299
    %373 = vmatpush2.bf16.msra.mxu0 %v298
    %374 = vmatprep.subr.bf16.mxu0 %v297
    %375 = vmatpush2.bf16.msra.mxu0 %v296
    %376 = vmatprep.mubr.bf16.mxu0 %v153
    %377 = vmatmul.mubr.bf16.gmra.mxu0 %v152
    %v378 = vpop.f32.mrf.mxu0
    %v379 = vadd.f32 0.0, %v378
    %v380 = vpop.f32.mrf.mxu0
    %v381 = vadd.f32 0.0, %v380
    %v382 = vpop.f32.mrf.mxu0
    %v383 = vadd.f32 0.0, %v382
    %v384 = vpop.f32.mrf.mxu0
    %v385 = vadd.f32 0.0, %v384
    %386 = vmatprep.mubr.bf16.mxu0 %v155
    %387 = vmatmul.mubr.bf16.gmra.mxu0 %v154
    %v388 = vpop.f32.mrf.mxu0
    %v389 = vadd.f32 0.0, %v388
    %v390 = vpop.f32.mrf.mxu0
    %v391 = vadd.f32 0.0, %v390
    %v392 = vpop.f32.mrf.mxu0
    %v393 = vadd.f32 0.0, %v392
    %v394 = vpop.f32.mrf.mxu0
    %v395 = vadd.f32 0.0, %v394
    %396 = vmatprep.mubr.bf16.mxu0 %v157
    %397 = vmatmul.mubr.bf16.gmra.mxu0 %v156
    %v398 = vpop.f32.mrf.mxu0
    %v399 = vadd.f32 0.0, %v398
    %v400 = vpop.f32.mrf.mxu0
    %v401 = vadd.f32 0.0, %v400
    %v402 = vpop.f32.mrf.mxu0
    %v403 = vadd.f32 0.0, %v402
    %v404 = vpop.f32.mrf.mxu0
    %v405 = vadd.f32 0.0, %v404
    %406 = vmatprep.mubr.bf16.mxu0 %v159
    %407 = vmatmul.mubr.bf16.gmra.mxu0 %v158
    %v408 = vpop.f32.mrf.mxu0
    %v409 = vadd.f32 0.0, %v408
    %v410 = vpop.f32.mrf.mxu0
    %v411 = vadd.f32 0.0, %v410
    %v412 = vpop.f32.mrf.mxu0
    %v413 = vadd.f32 0.0, %v412
    %v414 = vpop.f32.mrf.mxu0
    %v415 = vadd.f32 0.0, %v414
    %416 = vmatprep.mubr.bf16.mxu0 %v161
    %417 = vmatmul.mubr.bf16.gmra.mxu0 %v160
    %v418 = vpop.f32.mrf.mxu0
    %v419 = vadd.f32 0.0, %v418
    %v420 = vpop.f32.mrf.mxu0
    %v421 = vadd.f32 0.0, %v420
    %v422 = vpop.f32.mrf.mxu0
    %v423 = vadd.f32 0.0, %v422
    %v424 = vpop.f32.mrf.mxu0
    %v425 = vadd.f32 0.0, %v424
    %426 = vmatprep.mubr.bf16.mxu0 %v163
    %427 = vmatmul.mubr.bf16.gmra.mxu0 %v162
    %v428 = vpop.f32.mrf.mxu0
    %v429 = vadd.f32 0.0, %v428
    %v430 = vpop.f32.mrf.mxu0
    %v431 = vadd.f32 0.0, %v430
    %v432 = vpop.f32.mrf.mxu0
    %v433 = vadd.f32 0.0, %v432
    %v434 = vpop.f32.mrf.mxu0
    %v435 = vadd.f32 0.0, %v434
    %436 = vmatprep.mubr.bf16.mxu0 %v165
    %437 = vmatmul.mubr.bf16.gmra.mxu0 %v164
    %v438 = vpop.f32.mrf.mxu0
    %v439 = vadd.f32 0.0, %v438
    %v440 = vpop.f32.mrf.mxu0
    %v441 = vadd.f32 0.0, %v440
    %v442 = vpop.f32.mrf.mxu0
    %v443 = vadd.f32 0.0, %v442
    %v444 = vpop.f32.mrf.mxu0
    %v445 = vadd.f32 0.0, %v444
    %446 = vmatprep.mubr.bf16.mxu0 %v167
    %447 = vmatmul.mubr.bf16.gmra.mxu0 %v166
    %v448 = vpop.f32.mrf.mxu0
    %v449 = vadd.f32 0.0, %v448
    %v450 = vpop.f32.mrf.mxu0
    %v451 = vadd.f32 0.0, %v450
    %v452 = vpop.f32.mrf.mxu0
    %v453 = vadd.f32 0.0, %v452
    %v454 = vpop.f32.mrf.mxu0
    %v455 = vadd.f32 0.0, %v454
    %456 = vdwg.mxu0
    %v457 = vmax.f32 %v379, 0.0
    %v458 = vmax.f32 %v381, 0.0
    %v459 = vmax.f32 %v383, 0.0
    %v460 = vmax.f32 %v385, 0.0
    %v461 = vmax.f32 %v389, 0.0
    %v462 = vmax.f32 %v391, 0.0
    %v463 = vmax.f32 %v393, 0.0
    %v464 = vmax.f32 %v395, 0.0
    %v465 = vmax.f32 %v399, 0.0
    %v466 = vmax.f32 %v401, 0.0
    %v467 = vmax.f32 %v403, 0.0
    %v468 = vmax.f32 %v405, 0.0
    %v469 = vmax.f32 %v409, 0.0
    %v470 = vmax.f32 %v411, 0.0
    %v471 = vmax.f32 %v413, 0.0
    %v472 = vmax.f32 %v415, 0.0
    %v473 = vmax.f32 %v419, 0.0
    %v474 = vmax.f32 %v421, 0.0
    %v475 = vmax.f32 %v423, 0.0
    %v476 = vmax.f32 %v425, 0.0
    %v477 = vmax.f32 %v429, 0.0
    %v478 = vmax.f32 %v431, 0.0
    %v479 = vmax.f32 %v433, 0.0
    %v480 = vmax.f32 %v435, 0.0
    %v481 = vmax.f32 %v439, 0.0
    %v482 = vmax.f32 %v441, 0.0
    %v483 = vmax.f32 %v443, 0.0
    %v484 = vmax.f32 %v445, 0.0
    %v485 = vmax.f32 %v449, 0.0
    %v486 = vmax.f32 %v451, 0.0
    %v487 = vmax.f32 %v453, 0.0
    %v488 = vmax.f32 %v455, 0.0
    %v489 = vpack.c.bf16 %v459, %v457
    %v490 = vpack.c.bf16 %v460, %v458
    %v491 = vpack.c.bf16 %v463, %v461
    %v492 = vpack.c.bf16 %v464, %v462
    %v493 = vpack.c.bf16 %v467, %v465
    %v494 = vpack.c.bf16 %v468, %v466
    %v495 = vpack.c.bf16 %v471, %v469
    %v496 = vpack.c.bf16 %v472, %v470
    %v497 = vpack.c.bf16 %v475, %v473
    %v498 = vpack.c.bf16 %v476, %v474
    %v499 = vpack.c.bf16 %v479, %v477
    %v500 = vpack.c.bf16 %v480, %v478
    %v501 = vpack.c.bf16 %v483, %v481
    %v502 = vpack.c.bf16 %v484, %v482
    %v503 = vpack.c.bf16 %v487, %v485
    %v504 = vpack.c.bf16 %v488, %v486
    %v505 = vld [vmem:[#allocation6] sm:$0xff]
    %v506 = vld [vmem:[#allocation6 + $0x8] sm:$0xff]
    %v507 = vld [vmem:[#allocation6 + $0x10] sm:$0xff]
    %v508 = vld [vmem:[#allocation6 + $0x18] sm:$0xff]
    %v509 = vld [vmem:[#allocation6 + $0x20] sm:$0xff]
    %v510 = vld [vmem:[#allocation6 + $0x28] sm:$0xff]
    %v511 = vld [vmem:[#allocation6 + $0x30] sm:$0xff]
    %v512 = vld [vmem:[#allocation6 + $0x38] sm:$0xff]
    %v513 = vld [vmem:[#allocation6 + $0x40] sm:$0xff]
    %v514 = vld [vmem:[#allocation6 + $0x48] sm:$0xff]
    %v515 = vld [vmem:[#allocation6 + $0x50] sm:$0xff]
    %v516 = vld [vmem:[#allocation6 + $0x58] sm:$0xff]
    %v517 = vld [vmem:[#allocation6 + $0x60] sm:$0xff]
    %v518 = vld [vmem:[#allocation6 + $0x68] sm:$0xff]
    %v519 = vld [vmem:[#allocation6 + $0x70] sm:$0xff]
    %v520 = vld [vmem:[#allocation6 + $0x78] sm:$0xff]
    %v521 = vld [vmem:[#allocation6 + $0x80] sm:$0xff]
    %v522 = vld [vmem:[#allocation6 + $0x88] sm:$0xff]
    %v523 = vld [vmem:[#allocation6 + $0x90] sm:$0xff]
    %v524 = vld [vmem:[#allocation6 + $0x98] sm:$0xff]
    %v525 = vld [vmem:[#allocation6 + $0xa0] sm:$0xff]
    %v526 = vld [vmem:[#allocation6 + $0xa8] sm:$0xff]
    %v527 = vld [vmem:[#allocation6 + $0xb0] sm:$0xff]
    %v528 = vld [vmem:[#allocation6 + $0xb8] sm:$0xff]
    %v529 = vld [vmem:[#allocation6 + $0xc0] sm:$0xff]
    %v530 = vld [vmem:[#allocation6 + $0xc8] sm:$0xff]
    %v531 = vld [vmem:[#allocation6 + $0xd0] sm:$0xff]
    %v532 = vld [vmem:[#allocation6 + $0xd8] sm:$0xff]
    %v533 = vld [vmem:[#allocation6 + $0xe0] sm:$0xff]
    %v534 = vld [vmem:[#allocation6 + $0xe8] sm:$0xff]
    %v535 = vld [vmem:[#allocation6 + $0xf0] sm:$0xff]
    %v536 = vld [vmem:[#allocation6 + $0xf8] sm:$0xff]
    %v569 = vunpack.c.l.b16 %v505
    %v570 = vunpack.c.h.b16 %v505
    %v571 = vunpack.c.l.b16 %v506
    %v572 = vunpack.c.h.b16 %v506
    %v573 = vunpack.c.l.b16 %v507
    %v574 = vunpack.c.h.b16 %v507
    %v575 = vunpack.c.l.b16 %v508
    %v576 = vunpack.c.h.b16 %v508
    %v577 = vunpack.c.l.b16 %v509
    %v578 = vunpack.c.h.b16 %v509
    %v579 = vunpack.c.l.b16 %v510
    %v580 = vunpack.c.h.b16 %v510
    %v581 = vunpack.c.l.b16 %v511
    %v582 = vunpack.c.h.b16 %v511
    %v583 = vunpack.c.l.b16 %v512
    %v584 = vunpack.c.h.b16 %v512
    %v585 = vunpack.c.l.b16 %v513
    %v586 = vunpack.c.h.b16 %v513
    %v587 = vunpack.c.l.b16 %v514
    %v588 = vunpack.c.h.b16 %v514
    %v589 = vunpack.c.l.b16 %v515
    %v590 = vunpack.c.h.b16 %v515
    %v591 = vunpack.c.l.b16 %v516
    %v592 = vunpack.c.h.b16 %v516
    %v593 = vunpack.c.l.b16 %v517
    %v594 = vunpack.c.h.b16 %v517
    %v595 = vunpack.c.l.b16 %v518
    %v596 = vunpack.c.h.b16 %v518
    %v597 = vunpack.c.l.b16 %v519
    %v598 = vunpack.c.h.b16 %v519
    %v599 = vunpack.c.l.b16 %v520
    %v600 = vunpack.c.h.b16 %v520
    %v601 = vunpack.c.l.b16 %v521
    %v602 = vunpack.c.h.b16 %v521
    %v603 = vunpack.c.l.b16 %v522
    %v604 = vunpack.c.h.b16 %v522
    %v605 = vunpack.c.l.b16 %v523
    %v606 = vunpack.c.h.b16 %v523
    %v607 = vunpack.c.l.b16 %v524
    %v608 = vunpack.c.h.b16 %v524
    %v609 = vunpack.c.l.b16 %v525
    %v610 = vunpack.c.h.b16 %v525
    %v611 = vunpack.c.l.b16 %v526
    %v612 = vunpack.c.h.b16 %v526
    %v613 = vunpack.c.l.b16 %v527
    %v614 = vunpack.c.h.b16 %v527
    %v615 = vunpack.c.l.b16 %v528
    %v616 = vunpack.c.h.b16 %v528
    %v617 = vunpack.c.l.b16 %v529
    %v618 = vunpack.c.h.b16 %v529
    %v619 = vunpack.c.l.b16 %v530
    %v620 = vunpack.c.h.b16 %v530
    %v621 = vunpack.c.l.b16 %v531
    %v622 = vunpack.c.h.b16 %v531
    %v623 = vunpack.c.l.b16 %v532
    %v624 = vunpack.c.h.b16 %v532
    %v625 = vunpack.c.l.b16 %v533
    %v626 = vunpack.c.h.b16 %v533
    %v627 = vunpack.c.l.b16 %v534
    %v628 = vunpack.c.h.b16 %v534
    %v629 = vunpack.c.l.b16 %v535
    %v630 = vunpack.c.h.b16 %v535
    %v631 = vunpack.c.l.b16 %v536
    %v632 = vunpack.c.h.b16 %v536
    %v633 = vpack.c.b16 %v571, %v569
    %v634 = vpack.c.b16 %v572, %v570
    %v635 = vpack.c.b16 %v575, %v573
    %v636 = vpack.c.b16 %v576, %v574
    %v637 = vpack.c.b16 %v579, %v577
    %v638 = vpack.c.b16 %v580, %v578
    %v639 = vpack.c.b16 %v583, %v581
    %v640 = vpack.c.b16 %v584, %v582
    %v641 = vpack.c.b16 %v587, %v585
    %v642 = vpack.c.b16 %v588, %v586
    %v643 = vpack.c.b16 %v591, %v589
    %v644 = vpack.c.b16 %v592, %v590
    %v645 = vpack.c.b16 %v595, %v593
    %v646 = vpack.c.b16 %v596, %v594
    %v647 = vpack.c.b16 %v599, %v597
    %v648 = vpack.c.b16 %v600, %v598
    %v649 = vpack.c.b16 %v603, %v601
    %v650 = vpack.c.b16 %v604, %v602
    %v651 = vpack.c.b16 %v607, %v605
    %v652 = vpack.c.b16 %v608, %v606
    %v653 = vpack.c.b16 %v611, %v609
    %v654 = vpack.c.b16 %v612, %v610
    %v655 = vpack.c.b16 %v615, %v613
    %v656 = vpack.c.b16 %v616, %v614
    %v657 = vpack.c.b16 %v619, %v617
    %v658 = vpack.c.b16 %v620, %v618
    %v659 = vpack.c.b16 %v623, %v621
    %v660 = vpack.c.b16 %v624, %v622
    %v661 = vpack.c.b16 %v627, %v625
    %v662 = vpack.c.b16 %v628, %v626
    %v663 = vpack.c.b16 %v631, %v629
    %v664 = vpack.c.b16 %v632, %v630
    %697 = vmatprep.subr.bf16.mxu0 %v648
    %698 = vmatpush1.bf16.msra.mxu0 %v647
    %699 = vmatprep.subr.bf16.mxu0 %v646
    %700 = vmatpush1.bf16.msra.mxu0 %v645
    %701 = vmatprep.subr.bf16.mxu0 %v644
    %702 = vmatpush1.bf16.msra.mxu0 %v643
    %703 = vmatprep.subr.bf16.mxu0 %v642
    %704 = vmatpush1.bf16.msra.mxu0 %v641
    %705 = vmatprep.subr.bf16.mxu0 %v640
    %706 = vmatpush1.bf16.msra.mxu0 %v639
    %707 = vmatprep.subr.bf16.mxu0 %v638
    %708 = vmatpush1.bf16.msra.mxu0 %v637
    %709 = vmatprep.subr.bf16.mxu0 %v636
    %710 = vmatpush1.bf16.msra.mxu0 %v635
    %711 = vmatprep.subr.bf16.mxu0 %v634
    %712 = vmatpush1.bf16.msra.mxu0 %v633
    %713 = vmatprep.subr.bf16.mxu0 %v664
    %714 = vmatpush2.bf16.msra.mxu0 %v663
    %715 = vmatprep.subr.bf16.mxu0 %v662
    %716 = vmatpush2.bf16.msra.mxu0 %v661
    %717 = vmatprep.subr.bf16.mxu0 %v660
    %718 = vmatpush2.bf16.msra.mxu0 %v659
    %719 = vmatprep.subr.bf16.mxu0 %v658
    %720 = vmatpush2.bf16.msra.mxu0 %v657
    %721 = vmatprep.subr.bf16.mxu0 %v656
    %722 = vmatpush2.bf16.msra.mxu0 %v655
    %723 = vmatprep.subr.bf16.mxu0 %v654
    %724 = vmatpush2.bf16.msra.mxu0 %v653
    %725 = vmatprep.subr.bf16.mxu0 %v652
    %726 = vmatpush2.bf16.msra.mxu0 %v651
    %727 = vmatprep.subr.bf16.mxu0 %v650
    %728 = vmatpush2.bf16.msra.mxu0 %v649
    %729 = vmatprep.mubr.bf16.mxu0 %v490
    %730 = vmatmul.mubr.bf16.gmra.mxu0 %v489
    %v731 = vpop.f32.mrf.mxu0
    %v732 = vadd.f32 0.0, %v731
    %v733 = vpop.f32.mrf.mxu0
    %v734 = vadd.f32 0.0, %v733
    %v735 = vpop.f32.mrf.mxu0
    %v736 = vadd.f32 0.0, %v735
    %v737 = vpop.f32.mrf.mxu0
    %v738 = vadd.f32 0.0, %v737
    %739 = vmatprep.mubr.bf16.mxu0 %v492
    %740 = vmatmul.mubr.bf16.gmra.mxu0 %v491
    %v741 = vpop.f32.mrf.mxu0
    %v742 = vadd.f32 0.0, %v741
    %v743 = vpop.f32.mrf.mxu0
    %v744 = vadd.f32 0.0, %v743
    %v745 = vpop.f32.mrf.mxu0
    %v746 = vadd.f32 0.0, %v745
    %v747 = vpop.f32.mrf.mxu0
    %v748 = vadd.f32 0.0, %v747
    %749 = vmatprep.mubr.bf16.mxu0 %v494
    %750 = vmatmul.mubr.bf16.gmra.mxu0 %v493
    %v751 = vpop.f32.mrf.mxu0
    %v752 = vadd.f32 0.0, %v751
    %v753 = vpop.f32.mrf.mxu0
    %v754 = vadd.f32 0.0, %v753
    %v755 = vpop.f32.mrf.mxu0
    %v756 = vadd.f32 0.0, %v755
    %v757 = vpop.f32.mrf.mxu0
    %v758 = vadd.f32 0.0, %v757
    %759 = vmatprep.mubr.bf16.mxu0 %v496
    %760 = vmatmul.mubr.bf16.gmra.mxu0 %v495
    %v761 = vpop.f32.mrf.mxu0
    %v762 = vadd.f32 0.0, %v761
    %v763 = vpop.f32.mrf.mxu0
    %v764 = vadd.f32 0.0, %v763
    %v765 = vpop.f32.mrf.mxu0
    %v766 = vadd.f32 0.0, %v765
    %v767 = vpop.f32.mrf.mxu0
    %v768 = vadd.f32 0.0, %v767
    %769 = vmatprep.mubr.bf16.mxu0 %v498
    %770 = vmatmul.mubr.bf16.gmra.mxu0 %v497
    %v771 = vpop.f32.mrf.mxu0
    %v772 = vadd.f32 0.0, %v771
    %v773 = vpop.f32.mrf.mxu0
    %v774 = vadd.f32 0.0, %v773
    %v775 = vpop.f32.mrf.mxu0
    %v776 = vadd.f32 0.0, %v775
    %v777 = vpop.f32.mrf.mxu0
    %v778 = vadd.f32 0.0, %v777
    %779 = vmatprep.mubr.bf16.mxu0 %v500
    %780 = vmatmul.mubr.bf16.gmra.mxu0 %v499
    %v781 = vpop.f32.mrf.mxu0
    %v782 = vadd.f32 0.0, %v781
    %v783 = vpop.f32.mrf.mxu0
    %v784 = vadd.f32 0.0, %v783
    %v785 = vpop.f32.mrf.mxu0
    %v786 = vadd.f32 0.0, %v785
    %v787 = vpop.f32.mrf.mxu0
    %v788 = vadd.f32 0.0, %v787
    %789 = vmatprep.mubr.bf16.mxu0 %v502
    %790 = vmatmul.mubr.bf16.gmra.mxu0 %v501
    %v791 = vpop.f32.mrf.mxu0
    %v792 = vadd.f32 0.0, %v791
    %v793 = vpop.f32.mrf.mxu0
    %v794 = vadd.f32 0.0, %v793
    %v795 = vpop.f32.mrf.mxu0
    %v796 = vadd.f32 0.0, %v795
    %v797 = vpop.f32.mrf.mxu0
    %v798 = vadd.f32 0.0, %v797
    %799 = vmatprep.mubr.bf16.mxu0 %v504
    %800 = vmatmul.mubr.bf16.gmra.mxu0 %v503
    %v801 = vpop.f32.mrf.mxu0
    %v802 = vadd.f32 0.0, %v801
    %v803 = vpop.f32.mrf.mxu0
    %v804 = vadd.f32 0.0, %v803
    %v805 = vpop.f32.mrf.mxu0
    %v806 = vadd.f32 0.0, %v805
    %v807 = vpop.f32.mrf.mxu0
    %v808 = vadd.f32 0.0, %v807
    %809 = vdwg.mxu0
    %v810 = vpack.c.bf16 %v736, %v732
    %v811 = vpack.c.bf16 %v738, %v734
    %v812 = vpack.c.bf16 %v746, %v742
    %v813 = vpack.c.bf16 %v748, %v744
    %v814 = vpack.c.bf16 %v756, %v752
    %v815 = vpack.c.bf16 %v758, %v754
    %v816 = vpack.c.bf16 %v766, %v762
    %v817 = vpack.c.bf16 %v768, %v764
    %v818 = vpack.c.bf16 %v776, %v772
    %v819 = vpack.c.bf16 %v778, %v774
    %v820 = vpack.c.bf16 %v786, %v782
    %v821 = vpack.c.bf16 %v788, %v784
    %v822 = vpack.c.bf16 %v796, %v792
    %v823 = vpack.c.bf16 %v798, %v794
    %v824 = vpack.c.bf16 %v806, %v802
    %v825 = vpack.c.bf16 %v808, %v804
    %v826 = vld [vmem:[#allocation2] sm:$0xf]
    %v827 = vld [vmem:[#allocation2 + $0x8] sm:$0xf]
    %v828 = vld [vmem:[#allocation2 + $0x10] sm:$0xf]
    %v829 = vld [vmem:[#allocation2 + $0x18] sm:$0xf]
    %v830 = vld [vmem:[#allocation2 + $0x20] sm:$0xf]
    %v831 = vld [vmem:[#allocation2 + $0x28] sm:$0xf]
    %v832 = vld [vmem:[#allocation2 + $0x30] sm:$0xf]
    %v833 = vld [vmem:[#allocation2 + $0x38] sm:$0xf]
    %v834 = vld [vmem:[#allocation2 + $0x40] sm:$0xf]
    %v835 = vld [vmem:[#allocation2 + $0x48] sm:$0xf]
    %v836 = vld [vmem:[#allocation2 + $0x50] sm:$0xf]
    %v837 = vld [vmem:[#allocation2 + $0x58] sm:$0xf]
    %v838 = vld [vmem:[#allocation2 + $0x60] sm:$0xf]
    %v839 = vld [vmem:[#allocation2 + $0x68] sm:$0xf]
    %v840 = vld [vmem:[#allocation2 + $0x70] sm:$0xf]
    %v841 = vld [vmem:[#allocation2 + $0x78] sm:$0xf]
    %v842 = vld [vmem:[#allocation2 + $0x4] sm:$0xf]
    %v843 = vld [vmem:[#allocation2 + $0xc] sm:$0xf]
    %v844 = vld [vmem:[#allocation2 + $0x14] sm:$0xf]
    %v845 = vld [vmem:[#allocation2 + $0x1c] sm:$0xf]
    %v846 = vld [vmem:[#allocation2 + $0x24] sm:$0xf]
    %v847 = vld [vmem:[#allocation2 + $0x2c] sm:$0xf]
    %v848 = vld [vmem:[#allocation2 + $0x34] sm:$0xf]
    %v849 = vld [vmem:[#allocation2 + $0x3c] sm:$0xf]
    %v850 = vld [vmem:[#allocation2 + $0x44] sm:$0xf]
    %v851 = vld [vmem:[#allocation2 + $0x4c] sm:$0xf]
    %v852 = vld [vmem:[#allocation2 + $0x54] sm:$0xf]
    %v853 = vld [vmem:[#allocation2 + $0x5c] sm:$0xf]
    %v854 = vld [vmem:[#allocation2 + $0x64] sm:$0xf]
    %v855 = vld [vmem:[#allocation2 + $0x6c] sm:$0xf]
    %v856 = vld [vmem:[#allocation2 + $0x74] sm:$0xf]
    %v857 = vld [vmem:[#allocation2 + $0x7c] sm:$0xf]
    %v874 = vunpack.c.l.b16 %v842
    %v875 = vunpack.c.l.b16 %v843
    %v876 = vunpack.c.l.b16 %v844
    %v877 = vunpack.c.l.b16 %v845
    %v878 = vunpack.c.l.b16 %v846
    %v879 = vunpack.c.l.b16 %v847
    %v880 = vunpack.c.l.b16 %v848
    %v881 = vunpack.c.l.b16 %v849
    %v882 = vunpack.c.l.b16 %v850
    %v883 = vunpack.c.l.b16 %v851
    %v884 = vunpack.c.l.b16 %v852
    %v885 = vunpack.c.l.b16 %v853
    %v886 = vunpack.c.l.b16 %v854
    %v887 = vunpack.c.l.b16 %v855
    %v888 = vunpack.c.l.b16 %v856
    %v889 = vunpack.c.l.b16 %v857
    %v890 = vpack.c.b16 %v875, %v874
    %v891 = vpack.c.b16 %v877, %v876
    %v892 = vpack.c.b16 %v879, %v878
    %v893 = vpack.c.b16 %v881, %v880
    %v894 = vpack.c.b16 %v883, %v882
    %v895 = vpack.c.b16 %v885, %v884
    %v896 = vpack.c.b16 %v887, %v886
    %v897 = vpack.c.b16 %v889, %v888
    %906 = vmatprep.subr.bf16.mxu0 0
    %907 = vmatpush1.bf16.msra.mxu0 %v825
    %908 = vmatprep.subr.bf16.mxu0 0
    %909 = vmatpush1.bf16.msra.mxu0 %v823
    %910 = vmatprep.subr.bf16.mxu0 0
    %911 = vmatpush1.bf16.msra.mxu0 %v821
    %912 = vmatprep.subr.bf16.mxu0 0
    %913 = vmatpush1.bf16.msra.mxu0 %v819
    %914 = vmatprep.subr.bf16.mxu0 0
    %915 = vmatpush1.bf16.msra.mxu0 %v817
    %916 = vmatprep.subr.bf16.mxu0 0
    %917 = vmatpush1.bf16.msra.mxu0 %v815
    %918 = vmatprep.subr.bf16.mxu0 0
    %919 = vmatpush1.bf16.msra.mxu0 %v813
    %920 = vmatprep.subr.bf16.mxu0 0
    %921 = vmatpush1.bf16.msra.mxu0 %v811
    %922 = vmatprep.subr.bf16.mxu0 0
    %923 = vmatpush2.bf16.msra.mxu0 0
    %924 = vmatprep.subr.bf16.mxu0 0
    %925 = vmatpush2.bf16.msra.mxu0 0
    %926 = vmatprep.subr.bf16.mxu0 0
    %927 = vmatpush2.bf16.msra.mxu0 0
    %928 = vmatprep.subr.bf16.mxu0 0
    %929 = vmatpush2.bf16.msra.mxu0 0
    %930 = vmatprep.subr.bf16.mxu0 0
    %931 = vmatpush2.bf16.msra.mxu0 0
    %932 = vmatprep.subr.bf16.mxu0 0
    %933 = vmatpush2.bf16.msra.mxu0 0
    %934 = vmatprep.subr.bf16.mxu0 0
    %935 = vmatpush2.bf16.msra.mxu0 0
    %936 = vmatprep.subr.bf16.mxu0 0
    %937 = vmatpush2.bf16.msra.mxu0 0
    %938 = vmatprep.mubr.bf16.mxu0 0
    %939 = vmatmul.mubr.bf16.gmra.mxu0 %v890
    %v940 = vpop.f32.mrf.mxu0
    %v941 = vadd.f32 0.0, %v940
    %v942 = vpop.f32.mrf.mxu0
    %v943 = vpop.f32.mrf.mxu0
    %v944 = vadd.f32 0.0, %v943
    %v945 = vpop.f32.mrf.mxu0
    %946 = vmatprep.mubr.bf16.mxu0 0
    %947 = vmatmul.mubr.bf16.gmra.mxu0 %v891
    %v948 = vpop.f32.mrf.mxu0
    %v949 = vadd.f32 0.0, %v948
    %v950 = vpop.f32.mrf.mxu0
    %v951 = vpop.f32.mrf.mxu0
    %v952 = vadd.f32 0.0, %v951
    %v953 = vpop.f32.mrf.mxu0
    %954 = vmatprep.mubr.bf16.mxu0 0
    %955 = vmatmul.mubr.bf16.gmra.mxu0 %v892
    %v956 = vpop.f32.mrf.mxu0
    %v957 = vadd.f32 0.0, %v956
    %v958 = vpop.f32.mrf.mxu0
    %v959 = vpop.f32.mrf.mxu0
    %v960 = vadd.f32 0.0, %v959
    %v961 = vpop.f32.mrf.mxu0
    %962 = vmatprep.mubr.bf16.mxu0 0
    %963 = vmatmul.mubr.bf16.gmra.mxu0 %v893
    %v964 = vpop.f32.mrf.mxu0
    %v965 = vadd.f32 0.0, %v964
    %v966 = vpop.f32.mrf.mxu0
    %v967 = vpop.f32.mrf.mxu0
    %v968 = vadd.f32 0.0, %v967
    %v969 = vpop.f32.mrf.mxu0
    %970 = vmatprep.mubr.bf16.mxu0 0
    %971 = vmatmul.mubr.bf16.gmra.mxu0 %v894
    %v972 = vpop.f32.mrf.mxu0
    %v973 = vadd.f32 0.0, %v972
    %v974 = vpop.f32.mrf.mxu0
    %v975 = vpop.f32.mrf.mxu0
    %v976 = vadd.f32 0.0, %v975
    %v977 = vpop.f32.mrf.mxu0
    %978 = vmatprep.mubr.bf16.mxu0 0
    %979 = vmatmul.mubr.bf16.gmra.mxu0 %v895
    %v980 = vpop.f32.mrf.mxu0
    %v981 = vadd.f32 0.0, %v980
    %v982 = vpop.f32.mrf.mxu0
    %v983 = vpop.f32.mrf.mxu0
    %v984 = vadd.f32 0.0, %v983
    %v985 = vpop.f32.mrf.mxu0
    %986 = vmatprep.mubr.bf16.mxu0 0
    %987 = vmatmul.mubr.bf16.gmra.mxu0 %v896
    %v988 = vpop.f32.mrf.mxu0
    %v989 = vadd.f32 0.0, %v988
    %v990 = vpop.f32.mrf.mxu0
    %v991 = vpop.f32.mrf.mxu0
    %v992 = vadd.f32 0.0, %v991
    %v993 = vpop.f32.mrf.mxu0
    %994 = vmatprep.mubr.bf16.mxu0 0
    %995 = vmatmul.mubr.bf16.gmra.mxu0 %v897
    %v996 = vpop.f32.mrf.mxu0
    %v997 = vadd.f32 0.0, %v996
    %v998 = vpop.f32.mrf.mxu0
    %v999 = vpop.f32.mrf.mxu0
    %v1000 = vadd.f32 0.0, %v999
    %v1001 = vpop.f32.mrf.mxu0
    %1002 = vdwg.mxu0
    %v1019 = vunpack.c.l.b16 %v826
    %v1020 = vunpack.c.l.b16 %v827
    %v1021 = vunpack.c.l.b16 %v828
    %v1022 = vunpack.c.l.b16 %v829
    %v1023 = vunpack.c.l.b16 %v830
    %v1024 = vunpack.c.l.b16 %v831
    %v1025 = vunpack.c.l.b16 %v832
    %v1026 = vunpack.c.l.b16 %v833
    %v1027 = vunpack.c.l.b16 %v834
    %v1028 = vunpack.c.l.b16 %v835
    %v1029 = vunpack.c.l.b16 %v836
    %v1030 = vunpack.c.l.b16 %v837
    %v1031 = vunpack.c.l.b16 %v838
    %v1032 = vunpack.c.l.b16 %v839
    %v1033 = vunpack.c.l.b16 %v840
    %v1034 = vunpack.c.l.b16 %v841
    %v1035 = vpack.c.b16 %v1020, %v1019
    %v1036 = vpack.c.b16 %v1022, %v1021
    %v1037 = vpack.c.b16 %v1024, %v1023
    %v1038 = vpack.c.b16 %v1026, %v1025
    %v1039 = vpack.c.b16 %v1028, %v1027
    %v1040 = vpack.c.b16 %v1030, %v1029
    %v1041 = vpack.c.b16 %v1032, %v1031
    %v1042 = vpack.c.b16 %v1034, %v1033
    %1051 = vmatprep.subr.bf16.mxu0 0
    %1052 = vmatpush1.bf16.msra.mxu0 %v824
    %1053 = vmatprep.subr.bf16.mxu0 0
    %1054 = vmatpush1.bf16.msra.mxu0 %v822
    %1055 = vmatprep.subr.bf16.mxu0 0
    %1056 = vmatpush1.bf16.msra.mxu0 %v820
    %1057 = vmatprep.subr.bf16.mxu0 0
    %1058 = vmatpush1.bf16.msra.mxu0 %v818
    %1059 = vmatprep.subr.bf16.mxu0 0
    %1060 = vmatpush1.bf16.msra.mxu0 %v816
    %1061 = vmatprep.subr.bf16.mxu0 0
    %1062 = vmatpush1.bf16.msra.mxu0 %v814
    %1063 = vmatprep.subr.bf16.mxu0 0
    %1064 = vmatpush1.bf16.msra.mxu0 %v812
    %1065 = vmatprep.subr.bf16.mxu0 0
    %1066 = vmatpush1.bf16.msra.mxu0 %v810
    %1067 = vmatprep.subr.bf16.mxu0 0
    %1068 = vmatpush2.bf16.msra.mxu0 0
    %1069 = vmatprep.subr.bf16.mxu0 0
    %1070 = vmatpush2.bf16.msra.mxu0 0
    %1071 = vmatprep.subr.bf16.mxu0 0
    %1072 = vmatpush2.bf16.msra.mxu0 0
    %1073 = vmatprep.subr.bf16.mxu0 0
    %1074 = vmatpush2.bf16.msra.mxu0 0
    %1075 = vmatprep.subr.bf16.mxu0 0
    %1076 = vmatpush2.bf16.msra.mxu0 0
    %1077 = vmatprep.subr.bf16.mxu0 0
    %1078 = vmatpush2.bf16.msra.mxu0 0
    %1079 = vmatprep.subr.bf16.mxu0 0
    %1080 = vmatpush2.bf16.msra.mxu0 0
    %1081 = vmatprep.subr.bf16.mxu0 0
    %1082 = vmatpush2.bf16.msra.mxu0 0
    %1083 = vmatprep.mubr.bf16.mxu0 0
    %1084 = vmatmul.mubr.bf16.gmra.mxu0 %v1035
    %v1085 = vpop.f32.mrf.mxu0
    %v1086 = vadd.f32 %v941, %v1085
    %v1087 = vpop.f32.mrf.mxu0
    %v1088 = vpop.f32.mrf.mxu0
    %v1089 = vadd.f32 %v944, %v1088
    %v1090 = vpop.f32.mrf.mxu0
    %1091 = vmatprep.mubr.bf16.mxu0 0
    %1092 = vmatmul.mubr.bf16.gmra.mxu0 %v1036
    %v1093 = vpop.f32.mrf.mxu0
    %v1094 = vadd.f32 %v949, %v1093
    %v1095 = vpop.f32.mrf.mxu0
    %v1096 = vpop.f32.mrf.mxu0
    %v1097 = vadd.f32 %v952, %v1096
    %v1098 = vpop.f32.mrf.mxu0
    %1099 = vmatprep.mubr.bf16.mxu0 0
    %1100 = vmatmul.mubr.bf16.gmra.mxu0 %v1037
    %v1101 = vpop.f32.mrf.mxu0
    %v1102 = vadd.f32 %v957, %v1101
    %v1103 = vpop.f32.mrf.mxu0
    %v1104 = vpop.f32.mrf.mxu0
    %v1105 = vadd.f32 %v960, %v1104
    %v1106 = vpop.f32.mrf.mxu0
    %1107 = vmatprep.mubr.bf16.mxu0 0
    %1108 = vmatmul.mubr.bf16.gmra.mxu0 %v1038
    %v1109 = vpop.f32.mrf.mxu0
    %v1110 = vadd.f32 %v965, %v1109
    %v1111 = vpop.f32.mrf.mxu0
    %v1112 = vpop.f32.mrf.mxu0
    %v1113 = vadd.f32 %v968, %v1112
    %v1114 = vpop.f32.mrf.mxu0
    %1115 = vmatprep.mubr.bf16.mxu0 0
    %1116 = vmatmul.mubr.bf16.gmra.mxu0 %v1039
    %v1117 = vpop.f32.mrf.mxu0
    %v1118 = vadd.f32 %v973, %v1117
    %v1119 = vpop.f32.mrf.mxu0
    %v1120 = vpop.f32.mrf.mxu0
    %v1121 = vadd.f32 %v976, %v1120
    %v1122 = vpop.f32.mrf.mxu0
    %1123 = vmatprep.mubr.bf16.mxu0 0
    %1124 = vmatmul.mubr.bf16.gmra.mxu0 %v1040
    %v1125 = vpop.f32.mrf.mxu0
    %v1126 = vadd.f32 %v981, %v1125
    %v1127 = vpop.f32.mrf.mxu0
    %v1128 = vpop.f32.mrf.mxu0
    %v1129 = vadd.f32 %v984, %v1128
    %v1130 = vpop.f32.mrf.mxu0
    %1131 = vmatprep.mubr.bf16.mxu0 0
    %1132 = vmatmul.mubr.bf16.gmra.mxu0 %v1041
    %v1133 = vpop.f32.mrf.mxu0
    %v1134 = vadd.f32 %v989, %v1133
    %v1135 = vpop.f32.mrf.mxu0
    %v1136 = vpop.f32.mrf.mxu0
    %v1137 = vadd.f32 %v992, %v1136
    %v1138 = vpop.f32.mrf.mxu0
    %1139 = vmatprep.mubr.bf16.mxu0 0
    %1140 = vmatmul.mubr.bf16.gmra.mxu0 %v1042
    %v1141 = vpop.f32.mrf.mxu0
    %v1142 = vadd.f32 %v997, %v1141
    %v1143 = vpop.f32.mrf.mxu0
    %v1144 = vpop.f32.mrf.mxu0
    %v1145 = vadd.f32 %v1000, %v1144
    %v1146 = vpop.f32.mrf.mxu0
    %1147 = vdwg.mxu0
    %1148 = vst [vmem:[%s3] sm:$0xff] %v1086
    %1149 = vst [vmem:[%s3 + $0x8] sm:$0xff] %v1089
    %1150 = vst [vmem:[%s3 + $0x10] sm:$0xff] %v1094
    %1151 = vst [vmem:[%s3 + $0x18] sm:$0xff] %v1097
    %1152 = vst [vmem:[%s3 + $0x20] sm:$0xff] %v1102
    %1153 = vst [vmem:[%s3 + $0x28] sm:$0xff] %v1105
    %1154 = vst [vmem:[%s3 + $0x30] sm:$0xff] %v1110
    %1155 = vst [vmem:[%s3 + $0x38] sm:$0xff] %v1113
    %1156 = vst [vmem:[%s3 + $0x40] sm:$0xff] %v1118
    %1157 = vst [vmem:[%s3 + $0x48] sm:$0xff] %v1121
    %1158 = vst [vmem:[%s3 + $0x50] sm:$0xff] %v1126
    %1159 = vst [vmem:[%s3 + $0x58] sm:$0xff] %v1129
    %1160 = vst [vmem:[%s3 + $0x60] sm:$0xff] %v1134
    %1161 = vst [vmem:[%s3 + $0x68] sm:$0xff] %v1137
    %1162 = vst [vmem:[%s3 + $0x70] sm:$0xff] %v1142
    %1163 = vst [vmem:[%s3 + $0x78] sm:$0xff] %v1145
    // Predicated region
    $region26: #{gcn_forward_prepared.1} parent=1 // pred_check
      _
    $region27: #{gcn_forward_prepared.1} parent=1 // pred_check_branch
      %1165 = sbr.rel (0) target = $region29
    $region28: #{gcn_forward_prepared.1} parent=1 // pred_region
      _
    $region29: #{gcn_forward_prepared.1} parent=1 // pred_fallthru
      _
    // Predicated region
    $region30: #{gcn_forward_prepared.1} parent=1 // pred_check
      _
    $region31: #{gcn_forward_prepared.1} parent=1 // pred_check_branch
      %1167 = sbr.rel (0) target = $region33
    $region32: #{gcn_forward_prepared.1} parent=1 // pred_region
      _
    $region33: #{gcn_forward_prepared.1} parent=1 // pred_fallthru
      _
    %1168 = vsyncpa [#allocation3], 1
    %1169 = vsyncpa [#allocation5], 1

</llo_original>
